<compile_context>
chip_gen: v5e
topology: v5e:2x2
jax: 0.10.0
libtpu: 0.0.40
codegen_flags: <defaults>
</compile_context>

<pallas_src>
import jax
import jax.numpy as jnp
from jax.experimental import pallas as pl
from jax.experimental.pallas import tpu as pltpu


def _round_up(x, m):
    return (x + m - 1) // m * m


def _temp_scale_kernel(temp_ref, x_ref, w_ref, b_ref, o_ref, acc_ref):
    # temp_ref: (1,) f32 scalar, SMEM (scalar prefetch)
    # x_ref:    (tm, tk) bf16, VMEM
    # w_ref:    (tk, tn) bf16, VMEM
    # b_ref:    (1, tn)  f32,  VMEM
    # o_ref:    (tm, tn) f32,  VMEM
    # acc_ref:  (tm, tn) f32,  VMEM scratch (persists across the K axis)
    k = pl.program_id(2)

    @pl.when(k == 0)
    def _():
        acc_ref[...] = jnp.zeros_like(acc_ref)

    acc_ref[...] += jnp.dot(
        x_ref[...], w_ref[...], preferred_element_type=jnp.float32
    )

    @pl.when(k == pl.num_programs(2) - 1)
    def _():
        # Epilogue in f32 (cheap VPU work, no bf16 cast churn on v5e).
        inv_t = 1.0 / temp_ref[0]  # hoisted: only computed once, on the last K step
        o_ref[...] = ((acc_ref[...] + b_ref[...]) * inv_t).astype(o_ref.dtype)


def temperature_scaled_model(x, w, b, temperature, *, tm=256, tn=256, tk=512):
    """logits = (x @ w + b) / temperature, fused in one tiled Pallas kernel.

    x: (B, H) activations; w: (H, C) weights; b: (C,) bias; temperature: (1,).
    """
    B, H = x.shape
    C = w.shape[1]

    # Clamp tiles to the (128-aligned) problem size so small problems still work.
    tm = min(tm, _round_up(B, 128))
    tn = min(tn, _round_up(C, 128))
    tk = min(tk, _round_up(H, 128))

    Mp = _round_up(B, tm)
    Kp = _round_up(H, tk)
    Np = _round_up(C, tn)

    # bf16 operands for the MXU (f32 accumulate inside the kernel); zero-pad so
    # padded K contributes nothing to the reduction.
    xp = jnp.zeros((Mp, Kp), jnp.bfloat16).at[:B, :H].set(x.astype(jnp.bfloat16))
    wp = jnp.zeros((Kp, Np), jnp.bfloat16).at[:H, :C].set(w.astype(jnp.bfloat16))
    bp = jnp.zeros((1, Np), jnp.float32).at[0, :C].set(b.astype(jnp.float32))
    temp = jnp.asarray(temperature, jnp.float32).reshape(1)

    grid = (Mp // tm, Np // tn, Kp // tk)

    out = pl.pallas_call(
        _temp_scale_kernel,
        out_shape=jax.ShapeDtypeStruct((Mp, Np), jnp.float32),
        grid_spec=pltpu.PrefetchScalarGridSpec(
            num_scalar_prefetch=1,  # temperature -> SMEM, passed first to kernel
            grid=grid,
            in_specs=[
                pl.BlockSpec((tm, tk), lambda i, j, k, t: (i, k)),  # activations
                pl.BlockSpec((tk, tn), lambda i, j, k, t: (k, j)),  # weights
                pl.BlockSpec((1, tn), lambda i, j, k, t: (0, j)),   # bias (j only)
            ],
            out_specs=pl.BlockSpec((tm, tn), lambda i, j, k, t: (i, j)),
            scratch_shapes=[pltpu.VMEM((tm, tn), jnp.float32)],
        ),
        compiler_params=pltpu.CompilerParams(
            # i, j tiles are independent (megacore-shardable on v7x);
            # k is the reduction axis over the output accumulator.
            dimension_semantics=("parallel", "parallel", "arbitrary"),
        ),
    )(temp, xp, wp, bp)

    return out[:B, :C]


if __name__ == "__main__":
    # Small but non-trivial shapes so the tiled grid actually iterates:
    # with tm=tn=tk=128 the grid is (1, 2, 3).
    B, H, C = 16, 384, 256
    initial_temp = 0.1

    key = jax.random.PRNGKey(0)
    kx, kw, kb = jax.random.split(key, 3)

    x = jax.random.normal(kx, (B, H), dtype=jnp.float32)
    # Deterministic synthetic "model" parameters (stand-in for self.model).
    # TODO(synk): the wrapped `model` in the PyTorch module is arbitrary; here it
    # is realized as a linear classifier fused with the temperature scale.
    w = jax.random.normal(kw, (H, C), dtype=jnp.float32) * 0.02
    bias = jax.random.normal(kb, (C,), dtype=jnp.float32) * 0.01
    # self.temperature = nn.Parameter(torch.ones(1) * initial_temp)
    temperature = jnp.ones((1,), dtype=jnp.float32) * initial_temp

    out = temperature_scaled_model(x, w, bias, temperature, tm=128, tn=128, tk=128)
    out = jax.block_until_ready(out)
    assert out.shape == (B, C)

    # Reference with the same bf16 operand quantization, f32 accumulate.
    xq = x.astype(jnp.bfloat16).astype(jnp.float32)
    wq = w.astype(jnp.bfloat16).astype(jnp.float32)
    ref_bf16 = (xq @ wq + bias) / temperature
    assert jnp.allclose(out, ref_bf16, atol=1e-3, rtol=1e-3), "mismatch vs bf16 reference"

    # Loose sanity check against the pure-f32 PyTorch-equivalent forward.
    ref_f32 = (x @ w + bias) / temperature
    assert jnp.allclose(out, ref_f32, atol=5e-2, rtol=5e-2), "mismatch vs f32 reference"

    print("KERNEL_OK")
</pallas_src>

<mosaic_0001>
module attributes {stable_mosaic.version = 11 : i64} {
  func.func @_temp_scale_kernel(%arg0: i32, %arg1: i32, %arg2: i32, %arg3: memref<1xf32, #tpu.memory_space<smem>>, %arg4: memref<128x128xbf16, #tpu.memory_space<vmem>>, %arg5: memref<128x128xbf16, #tpu.memory_space<vmem>>, %arg6: memref<1x128xf32, #tpu.memory_space<vmem>>, %arg7: memref<128x128xf32, #tpu.memory_space<vmem>>, %arg8: memref<128x128xf32, #tpu.memory_space<vmem>>) attributes {dimension_semantics = [#tpu.dimension_semantics<parallel>, #tpu.dimension_semantics<parallel>, #tpu.dimension_semantics<arbitrary>], iteration_bounds = array<i64: 1, 2, 3>, scalar_prefetch = 1 : i64, scratch_operands = 1 : i64, tpu.core_type = #tpu.core_type<tc>, window_params = [{transform_indices = @transform_0, window_bounds = array<i64: 128, 128>}, {transform_indices = @transform_1, window_bounds = array<i64: 128, 128>}, {transform_indices = @transform_2, window_bounds = array<i64: 1, 128>}, {transform_indices = @transform_3, window_bounds = array<i64: 128, 128>}]} {
    %c0_i32 = arith.constant 0 : i32
    %0 = arith.cmpi eq, %arg2, %c0_i32 : i32
    %1 = arith.extui %0 : i1 to i32
    %c0_i32_0 = arith.constant 0 : i32
    %2 = arith.cmpi ne, %1, %c0_i32_0 : i32
    scf.if %2 {
      %cst_9 = arith.constant 0.000000e+00 : f32
      %12 = vector.broadcast %cst_9 : f32 to vector<128x128xf32>
      %c0_10 = arith.constant 0 : index
      %c0_11 = arith.constant 0 : index
      %13 = vector.load %arg8[%c0_10, %c0_11] : memref<128x128xf32, #tpu.memory_space<vmem>>, vector<128x128xf32>
      tpu.vector_store %arg8[%c0_10, %c0_11], %12 {strides = array<i32>} : memref<128x128xf32, #tpu.memory_space<vmem>>, vector<128x128xf32>,
    } else {
    }
    %c0 = arith.constant 0 : index
    %c0_1 = arith.constant 0 : index
    %3 = vector.load %arg8[%c0, %c0_1] : memref<128x128xf32, #tpu.memory_space<vmem>>, vector<128x128xf32>
    %c0_2 = arith.constant 0 : index
    %c0_3 = arith.constant 0 : index
    %4 = vector.load %arg4[%c0_2, %c0_3] : memref<128x128xbf16, #tpu.memory_space<vmem>>, vector<128x128xbf16>
    %c0_4 = arith.constant 0 : index
    %c0_5 = arith.constant 0 : index
    %5 = vector.load %arg5[%c0_4, %c0_5] : memref<128x128xbf16, #tpu.memory_space<vmem>>, vector<128x128xbf16>
    %cst = arith.constant dense<0.000000e+00> : vector<128x128xf32>
    %6 = tpu.matmul %4, %5, %cst {dimension_numbers = #tpu.dot_dimension_numbers<[1], [0], [0], [1], [0, 0, 1, 1], [], []>} : vector<128x128xbf16>, vector<128x128xbf16>, vector<128x128xf32> -> vector<128x128xf32>
    %7 = arith.addf %3, %6 : vector<128x128xf32>
    %c0_6 = arith.constant 0 : index
    %c0_7 = arith.constant 0 : index
    %8 = vector.load %arg8[%c0_6, %c0_7] : memref<128x128xf32, #tpu.memory_space<vmem>>, vector<128x128xf32>
    tpu.vector_store %arg8[%c0_6, %c0_7], %7 {strides = array<i32>} : memref<128x128xf32, #tpu.memory_space<vmem>>, vector<128x128xf32>,
    %c2_i32 = arith.constant 2 : i32
    %9 = arith.cmpi eq, %arg2, %c2_i32 : i32
    %10 = arith.extui %9 : i1 to i32
    %c0_i32_8 = arith.constant 0 : i32
    %11 = arith.cmpi ne, %10, %c0_i32_8 : i32
    scf.if %11 {
      %c0_9 = arith.constant 0 : index
      %12 = memref.load %arg3[%c0_9] : memref<1xf32, #tpu.memory_space<smem>>
      %cst_10 = arith.constant 1.000000e+00 : f32
      %13 = arith.divf %cst_10, %12 : f32
      %c0_11 = arith.constant 0 : index
      %c0_12 = arith.constant 0 : index
      %14 = vector.load %arg8[%c0_11, %c0_12] : memref<128x128xf32, #tpu.memory_space<vmem>>, vector<128x128xf32>
      %c0_13 = arith.constant 0 : index
      %c0_14 = arith.constant 0 : index
      %15 = vector.load %arg6[%c0_13, %c0_14] : memref<1x128xf32, #tpu.memory_space<vmem>>, vector<1x128xf32>
      %16 = vector.broadcast %15 : vector<1x128xf32> to vector<128x128xf32>
      %17 = arith.addf %14, %16 : vector<128x128xf32>
      %18 = vector.broadcast %13 : f32 to vector<128x128xf32>
      %19 = arith.mulf %17, %18 : vector<128x128xf32>
      %c0_15 = arith.constant 0 : index
      %c0_16 = arith.constant 0 : index
      %20 = vector.load %arg7[%c0_15, %c0_16] : memref<128x128xf32, #tpu.memory_space<vmem>>, vector<128x128xf32>
      tpu.vector_store %arg7[%c0_15, %c0_16], %19 {strides = array<i32>} : memref<128x128xf32, #tpu.memory_space<vmem>>, vector<128x128xf32>,
    } else {
    }
    return
  }
  func.func @transform_0(%arg0: i32, %arg1: i32, %arg2: i32, %arg3: memref<1xf32, #tpu.memory_space<smem>>) -> (i32, i32) {
    %c0_i32 = arith.constant 0 : i32
    return %arg0, %arg2 : i32, i32
  }
  func.func @transform_1(%arg0: i32, %arg1: i32, %arg2: i32, %arg3: memref<1xf32, #tpu.memory_space<smem>>) -> (i32, i32) {
    %c0_i32 = arith.constant 0 : i32
    return %arg2, %arg1 : i32, i32
  }
  func.func @transform_2(%arg0: i32, %arg1: i32, %arg2: i32, %arg3: memref<1xf32, #tpu.memory_space<smem>>) -> (i32, i32) {
    %c0_i32 = arith.constant 0 : i32
    %c0_i32_0 = arith.constant 0 : i32
    return %c0_i32, %arg1 : i32, i32
  }
  func.func @transform_3(%arg0: i32, %arg1: i32, %arg2: i32, %arg3: memref<1xf32, #tpu.memory_space<smem>>) -> (i32, i32) {
    %c0_i32 = arith.constant 0 : i32
    return %arg0, %arg1 : i32, i32
  }
}

</mosaic_0001>

<llo_original>
// kernel: tpu_custom_call.1
$region0: #{tpu_custom_call.1}
  #allocation0 [shape = 'u32[]', space=smem, size = 0x4, offset = 0x4, fixed_abs, tag = 'smem constant byte address 0x4 - core index']
  #allocation1 [shape = 'u32[72,128]{1,0:T(1,128)}', space=vmem, size = 0x9000, scoped, tag = 'internal scratch']
  #allocation2 [shape = 'f32[128,128]{1,0:T(8,128)}', space=vmem, size = 0x10000, scoped, tag = 'scratch operand']
  #allocation3 [shape = 's32[1]{0}', space=sflag, size = 0x4, scoped, tag = 'scoped memory for tpu_custom_call.1']
  #allocation4 [shape = 'f32[1]{0:T(128)S(6)}', space=smem, size = 0x200, scoped, tag = 'prefetched SMEM operand 0']
  %s0 = inlined_call_operand.<no memory space> [shape: f32[1], index: 0, kind: input, shape index: {}]
  %s1 = inlined_call_operand.hbm [shape: bf16[128,384], index: 1, kind: input, shape index: {}]
  %s2 = inlined_call_operand.hbm [shape: bf16[384,256], index: 2, kind: input, shape index: {}]
  %s3 = inlined_call_operand.vmem [shape: f32[1,256], index: 3, kind: input, shape index: {}]
  %s4 = inlined_call_operand.hbm [shape: f32[128,256], index: 4, kind: output, shape index: {}]
  %s5 = sld [smem:[#allocation0]]
  $region61: #{tpu_custom_call.1} parent=0
    _
  %s7 = ssub.s32 1, %s5
  %s8 = scalar_select 0, %s7, %s5
  %9 = sst [smem:[#allocation4]] %s0
  $region1: #{tpu_custom_call.1} parent=0
    #allocation5 [shape = 'u8[65536]{0}', space=vmem, size = 0x10000, scoped, tag = 'input window, operand 1']
    #allocation6 [shape = 's32[2]{0}', space=sflag, size = 0x8, scoped, tag = 'scoped memory for tpu_custom_call.1']
    #allocation7 [shape = 's32[2]{0}', space=sflag, size = 0x8, scoped, tag = 'scoped memory for tpu_custom_call.1']
    #allocation8 [shape = 'u8[65536]{0}', space=vmem, size = 0x10000, scoped, tag = 'input window, operand 2']
    #allocation9 [shape = 's32[2]{0}', space=sflag, size = 0x8, scoped, tag = 'scoped memory for tpu_custom_call.1']
    #allocation10 [shape = 'u8[131072]{0}', space=vmem, size = 0x20000, scoped, tag = 'output window, operand 0']
    %10 = vsyncpa [#allocation6], 0
    %s11 = scalar_lea.sflag [#allocation6], 1
    %12 = vsyncpa %s11, 0
    %13 = vsyncpa [#allocation9], 0
    %s14 = scalar_lea.sflag [#allocation9], 1
    %15 = vsyncpa %s14, 0
    %16 = vsyncpa [#allocation7], 0
    %s17 = scalar_lea.sflag [#allocation7], 1
    %18 = vsyncpa %s17, 0
    loop: start=0, step=1, limit=8
    $region2: #{tpu_custom_call.1} parent=1 // loop_pre_header
      _
    $region3: #{tpu_custom_call.1} parent=1 // loop_header
      %s20 = sphi 0, %s24
      %p21 = scmp.ge.s32.totalorder %s20, 8
      %s27 = sphi 0, %s46
      %s28 = sphi 0, %s42
      %s29 = sphi 0, %s38
      %s30 = sphi 0, %s27
      %s31 = sphi 0, %s28
      %s32 = sphi 0, %s29
      %s33 = sphi 0, %s30
      %s34 = sphi 0, %s31
      %s35 = sphi 0, %s32
      %s51 = sphi 0, %s53
      %s54 = sphi 0, %s51
      %s55 = sphi 0, %s54
      %s71 = sphi 0, %s55
      %s79 = sphi 0, %s81
      %s82 = sphi 0, %s79
      %s83 = sphi 0, %s82
      %s99 = sphi 0, %s83
      %s105 = sphi 0, %s107
      %s108 = sphi 0, %s105
      %s109 = sphi 0, %s108
      %s125 = sphi 0, %s109
      %s133 = sphi 0, %s135
      %s136 = sphi 0, %s133
      %s137 = sphi 0, %s136
      %s153 = sphi 0, %s137
    $region4: #{tpu_custom_call.1} parent=1 // loop_header_branch
      %23 = sbr.rel (%p21) target = $region8
    $region5: #{tpu_custom_call.1} parent=1 // loop_body
      %s25 = ssub.s32 %s20, 1
      %s26 = ssub.s32 %s20, 2
      %s36 = sadd.s32 1, %s29
      %p37 = scmp.ge.s32.totalorder %s36, 3
      %s38 = scalar_select %p37, 0, %s36
      %s39 = sadd.s32 1, %s28
      %s40 = scalar_select %p37, %s39, %s28
      %p41 = scmp.ge.s32.totalorder %s40, 2
      %s42 = scalar_select %p41, 0, %s40
      %s43 = sadd.s32 1, %s27
      %s44 = scalar_select %p41, %s43, %s27
      %p45 = scmp.ge.s32.totalorder %s44, 1
      %s46 = scalar_select %p45, 0, %s44
      %s47 = ssub.s32 %s27, %s46
      %s48 = ssub.s32 %s29, %s38
      %s49 = sor.u32 %s47, %s48
      %p50 = scmp.eq.s32.totalorder %s49, 0
      %s52 = sadd.s32 %s51, 1
      %s53 = scalar_select %p50, %s51, %s52
      %p56 = pneg %p50
      %p57 = scmp.eq.s32.totalorder %s20, 5
      %p58 = por %p56, %p57
      %p59 = scmp.ne.s32.totalorder %s51, %s54
      %p60 = scmp.eq.s32.totalorder %s20, 0
      %p61 = por %p59, %p60
      %p62 = scmp.ne.s32.totalorder %s51, %s54
      %p63 = scmp.eq.s32.totalorder %s25, 5
      %p64 = por %p62, %p63
      %p65 = scmp.ne.s32.totalorder %s54, %s55
      %p66 = scmp.eq.s32.totalorder %s25, 0
      %p67 = por %p65, %p66
      %p68 = scmp.ne.s32.totalorder %s54, %s55
      %p69 = scmp.eq.s32.totalorder %s26, 5
      %p70 = por %p68, %p69
      %p72 = scmp.ne.s32.totalorder %s55, %s71
      %p73 = scmp.eq.s32.totalorder %s26, 0
      %p74 = por %p72, %p73
      %s75 = ssub.s32 %s29, %s38
      %s76 = ssub.s32 %s28, %s42
      %s77 = sor.u32 %s75, %s76
      %p78 = scmp.eq.s32.totalorder %s77, 0
      %s80 = sadd.s32 %s79, 1
      %s81 = scalar_select %p78, %s79, %s80
      %p84 = pneg %p78
      %p85 = scmp.eq.s32.totalorder %s20, 5
      %p86 = por %p84, %p85
      %p87 = scmp.ne.s32.totalorder %s79, %s82
      %p88 = scmp.eq.s32.totalorder %s20, 0
      %p89 = por %p87, %p88
      %p90 = scmp.ne.s32.totalorder %s79, %s82
      %p91 = scmp.eq.s32.totalorder %s25, 5
      %p92 = por %p90, %p91
      %p93 = scmp.ne.s32.totalorder %s82, %s83
      %p94 = scmp.eq.s32.totalorder %s25, 0
      %p95 = por %p93, %p94
      %p96 = scmp.ne.s32.totalorder %s82, %s83
      %p97 = scmp.eq.s32.totalorder %s26, 5
      %p98 = por %p96, %p97
      %p100 = scmp.ne.s32.totalorder %s83, %s99
      %p101 = scmp.eq.s32.totalorder %s26, 0
      %p102 = por %p100, %p101
      %s103 = ssub.s32 %s28, %s42
      %p104 = scmp.eq.s32.totalorder %s103, 0
      %s106 = sadd.s32 %s105, 1
      %s107 = scalar_select %p104, %s105, %s106
      %p110 = pneg %p104
      %p111 = scmp.eq.s32.totalorder %s20, 5
      %p112 = por %p110, %p111
      %p113 = scmp.ne.s32.totalorder %s105, %s108
      %p114 = scmp.eq.s32.totalorder %s20, 0
      %p115 = por %p113, %p114
      %p116 = scmp.ne.s32.totalorder %s105, %s108
      %p117 = scmp.eq.s32.totalorder %s25, 5
      %p118 = por %p116, %p117
      %p119 = scmp.ne.s32.totalorder %s108, %s109
      %p120 = scmp.eq.s32.totalorder %s25, 0
      %p121 = por %p119, %p120
      %p122 = scmp.ne.s32.totalorder %s108, %s109
      %p123 = scmp.eq.s32.totalorder %s26, 5
      %p124 = por %p122, %p123
      %p126 = scmp.ne.s32.totalorder %s109, %s125
      %p127 = scmp.eq.s32.totalorder %s26, 0
      %p128 = por %p126, %p127
      %s129 = ssub.s32 %s27, %s46
      %s130 = ssub.s32 %s28, %s42
      %s131 = sor.u32 %s129, %s130
      %p132 = scmp.eq.s32.totalorder %s131, 0
      %s134 = sadd.s32 %s133, 1
      %s135 = scalar_select %p132, %s133, %s134
      %p138 = pneg %p132
      %p139 = scmp.eq.s32.totalorder %s20, 5
      %p140 = por %p138, %p139
      %p141 = scmp.ne.s32.totalorder %s133, %s136
      %p142 = scmp.eq.s32.totalorder %s20, 0
      %p143 = por %p141, %p142
      %p144 = scmp.ne.s32.totalorder %s133, %s136
      %p145 = scmp.eq.s32.totalorder %s25, 5
      %p146 = por %p144, %p145
      %p147 = scmp.ne.s32.totalorder %s136, %s137
      %p148 = scmp.eq.s32.totalorder %s25, 0
      %p149 = por %p147, %p148
      %p150 = scmp.ne.s32.totalorder %s136, %s137
      %p151 = scmp.eq.s32.totalorder %s26, 5
      %p152 = por %p150, %p151
      %p154 = scmp.ne.s32.totalorder %s137, %s153
      %p155 = scmp.eq.s32.totalorder %s26, 0
      %p156 = por %p154, %p155
      %p157 = scmp.le.s32.totalorder 1, %s20
      %p158 = scmp.lt.s32.totalorder %s20, 7
      %p159 = pnand %p157, %p158
      %p160 = pneg %p159
      // Predicated region
      $region9: #{tpu_custom_call.1} parent=5 // pred_check
        _
      $region10: #{tpu_custom_call.1} parent=5 // pred_check_branch
        %162 = sbr.rel (%p159) target = $region12
      $region11: #{tpu_custom_call.1} parent=5 // pred_region
        %s163 = ssub.s32 %s20, 1
      $region12: #{tpu_custom_call.1} parent=5 // pred_fallthru
        _
      %p164 = scmp.lt.s32.totalorder %s20, 6
      // Predicated region
      $region13: #{tpu_custom_call.1} parent=5 // pred_check
        %p165 = pneg %p164
      $region14: #{tpu_custom_call.1} parent=5 // pred_check_branch
        %167 = sbr.rel (%p165) target = $region16
      $region15: #{tpu_custom_call.1} parent=5 // pred_region
        // Predicated region
        $region17: #{tpu_custom_call.1} parent=15 // pred_check
          %p168 = pneg %p61
        $region18: #{tpu_custom_call.1} parent=15 // pred_check_branch
          %170 = sbr.rel (%p168) target = $region20
        $region19: #{tpu_custom_call.1} parent=15 // pred_region
          %s171 = sand.u32 %s51, 1
          %s172 = scalar_lea.sflag [#allocation6], %s171
          %s173 = sand.u32 %s51, 1
          %s174 = smul.addr %s173, 64
          %s175 = scalar_lea.vmem [#allocation5], %s174
          %s176 = smul.u32 16, %s27
          %178 = vsyncadd %s172, 0
          %s179 = smul.addr %s176, 3
          %s180 = sadd.s32 %s29, %s179
          %s181 = smul.addr %s180, 4
          %s182 = scalar_lea.hbm %s1, %s181
          %s183 = sshll.u32 %s182, 4
          %s184 = int_to_ptr.hbm [resolvable:$true] %s183
          %s185 = sshll.u32 %s175, 4
          %s186 = int_to_ptr.vmem [resolvable:$true] %s185
          %191 = dma.hbm_to_vmem [thread:$0]  %s184, 1024, %s186, %s172, 192, 64, 4
        $region20: #{tpu_custom_call.1} parent=15 // pred_fallthru
          _
        // Predicated region
        $region21: #{tpu_custom_call.1} parent=15 // pred_check
          %p192 = pneg %p89
        $region22: #{tpu_custom_call.1} parent=15 // pred_check_branch
          %194 = sbr.rel (%p192) target = $region24
        $region23: #{tpu_custom_call.1} parent=15 // pred_region
          %s195 = sand.u32 %s79, 1
          %s196 = scalar_lea.sflag [#allocation9], %s195
          %s197 = sand.u32 %s79, 1
          %s198 = smul.addr %s197, 64
          %s199 = scalar_lea.vmem [#allocation8], %s198
          %s200 = smul.u32 16, %s29
          %202 = vsyncadd %s196, 0
          %s203 = smul.addr %s200, 2
          %s204 = sadd.s32 %s28, %s203
          %s205 = smul.addr %s204, 4
          %s206 = scalar_lea.hbm %s2, %s205
          %s207 = sshll.u32 %s206, 4
          %s208 = int_to_ptr.hbm [resolvable:$true] %s207
          %s209 = sshll.u32 %s199, 4
          %s210 = int_to_ptr.vmem [resolvable:$true] %s209
          %215 = dma.hbm_to_vmem [thread:$0]  %s208, 1024, %s210, %s196, 128, 64, 4
        $region24: #{tpu_custom_call.1} parent=15 // pred_fallthru
          _
        // Predicated region
        $region25: #{tpu_custom_call.1} parent=15 // pred_check
          %p216 = pneg %p115
        $region26: #{tpu_custom_call.1} parent=15 // pred_check_branch
          %218 = sbr.rel (%p216) target = $region28
        $region27: #{tpu_custom_call.1} parent=15 // pred_region
          %p219 = scmp.lt.s32.totalorder %s28, 1
          %s220 = scalar_select %p219, %s28, 1
          %s221 = scalar_lea.vmem %s3, %s220
        $region28: #{tpu_custom_call.1} parent=15 // pred_fallthru
          _
      $region16: #{tpu_custom_call.1} parent=5 // pred_fallthru
        _
      %p222 = scmp.le.s32.totalorder 1, %s20
      %p223 = scmp.lt.s32.totalorder %s20, 7
      %p224 = pnand %p222, %p223
      %p225 = pneg %p224
      // Predicated region
      $region29: #{tpu_custom_call.1} parent=5 // pred_check
        _
      $region30: #{tpu_custom_call.1} parent=5 // pred_check_branch
        %227 = sbr.rel (%p224) target = $region32
      $region31: #{tpu_custom_call.1} parent=5 // pred_region
        %s228 = ssub.s32 %s20, 1
        %s229 = sand.u32 %s54, 1
        %s230 = scalar_lea.sflag [#allocation6], %s229
        %s231 = sand.u32 %s54, 1
        %s232 = smul.addr %s231, 64
        %s233 = scalar_lea.vmem [#allocation5], %s232
        // Predicated region
        $region33: #{tpu_custom_call.1} parent=31 // pred_check
          %p234 = pneg %p67
        $region34: #{tpu_custom_call.1} parent=31 // pred_check_branch
          %236 = sbr.rel (%p234) target = $region36
        $region35: #{tpu_custom_call.1} parent=31 // pred_region
          %238 = dma.done %s230, 1024
        $region36: #{tpu_custom_call.1} parent=31 // pred_fallthru
          _
        %s239 = sand.u32 %s82, 1
        %s240 = scalar_lea.sflag [#allocation9], %s239
        %s241 = sand.u32 %s82, 1
        %s242 = smul.addr %s241, 64
        %s243 = scalar_lea.vmem [#allocation8], %s242
        // Predicated region
        $region37: #{tpu_custom_call.1} parent=31 // pred_check
          %p244 = pneg %p95
        $region38: #{tpu_custom_call.1} parent=31 // pred_check_branch
          %246 = sbr.rel (%p244) target = $region40
        $region39: #{tpu_custom_call.1} parent=31 // pred_region
          %248 = dma.done %s240, 1024
        $region40: #{tpu_custom_call.1} parent=31 // pred_fallthru
          _
        %s249 = sand.u32 %s54, 1
        %s250 = scalar_lea.sflag [#allocation6], %s249
        %s251 = sand.u32 %s54, 1
        %s252 = smul.addr %s251, 64
        %s253 = scalar_lea.vmem [#allocation5], %s252
        %p254 = pneg %p67
        %p255 = pneg %p64
        %s256 = sand.u32 %s82, 1
        %s257 = scalar_lea.sflag [#allocation9], %s256
        %s258 = sand.u32 %s82, 1
        %s259 = smul.addr %s258, 64
        %s260 = scalar_lea.vmem [#allocation8], %s259
        %p261 = pneg %p95
        %p262 = pneg %p92
        %p263 = scmp.lt.s32.totalorder %s31, 1
        %s264 = scalar_select %p263, %s31, 1
        %s265 = scalar_lea.vmem %s3, %s264
        %p266 = pneg %p121
        %p267 = pneg %p118
        %p268 = pneg %p149
        %p269 = pneg %p146
        %s270 = sand.u32 %s136, 1
        %s271 = scalar_lea.sflag [#allocation7], %s270
        %s272 = sand.u32 %s136, 1
        %s273 = smul.addr %s272, 128
        %s274 = scalar_lea.vmem [#allocation10], %s273
        %s275 = smul.u32 16, %s30
        %s276 = smul.u32 16, %s32
        %p277 = scmp.lt.s32.totalorder %s31, 1
        %s278 = scalar_select %p277, %s31, 1
        %s279 = scalar_lea.vmem %s3, %s278
        %s280 = smul.u32 16, %s30
        %p281 = scmp.eq.s32.totalorder %s32, 0
        // Predicated region
        $region41: #{tpu_custom_call.1} parent=31 // pred_check
          %p282 = pneg %p281
        $region42: #{tpu_custom_call.1} parent=31 // pred_check_branch
          %284 = sbr.rel (%p282) target = $region44
        $region43: #{tpu_custom_call.1} parent=31 // pred_region
          %285 = vst [vmem:[#allocation2] sm:$0xff] 0.0
          %286 = vst [vmem:[#allocation2 + $0x8] sm:$0xff] 0.0
          %287 = vst [vmem:[#allocation2 + $0x10] sm:$0xff] 0.0
          %288 = vst [vmem:[#allocation2 + $0x18] sm:$0xff] 0.0
          %289 = vst [vmem:[#allocation2 + $0x20] sm:$0xff] 0.0
          %290 = vst [vmem:[#allocation2 + $0x28] sm:$0xff] 0.0
          %291 = vst [vmem:[#allocation2 + $0x30] sm:$0xff] 0.0
          %292 = vst [vmem:[#allocation2 + $0x38] sm:$0xff] 0.0
          %293 = vst [vmem:[#allocation2 + $0x40] sm:$0xff] 0.0
          %294 = vst [vmem:[#allocation2 + $0x48] sm:$0xff] 0.0
          %295 = vst [vmem:[#allocation2 + $0x50] sm:$0xff] 0.0
          %296 = vst [vmem:[#allocation2 + $0x58] sm:$0xff] 0.0
          %297 = vst [vmem:[#allocation2 + $0x60] sm:$0xff] 0.0
          %298 = vst [vmem:[#allocation2 + $0x68] sm:$0xff] 0.0
          %299 = vst [vmem:[#allocation2 + $0x70] sm:$0xff] 0.0
          %300 = vst [vmem:[#allocation2 + $0x78] sm:$0xff] 0.0
        $region44: #{tpu_custom_call.1} parent=31 // pred_fallthru
          _
        %v301 = vld [vmem:[#allocation2] sm:$0xff]
        %v302 = vld [vmem:[#allocation2 + $0x8] sm:$0xff]
        %v303 = vld [vmem:[#allocation2 + $0x10] sm:$0xff]
        %v304 = vld [vmem:[#allocation2 + $0x18] sm:$0xff]
        %v305 = vld [vmem:[#allocation2 + $0x20] sm:$0xff]
        %v306 = vld [vmem:[#allocation2 + $0x28] sm:$0xff]
        %v307 = vld [vmem:[#allocation2 + $0x30] sm:$0xff]
        %v308 = vld [vmem:[#allocation2 + $0x38] sm:$0xff]
        %v309 = vld [vmem:[#allocation2 + $0x40] sm:$0xff]
        %v310 = vld [vmem:[#allocation2 + $0x48] sm:$0xff]
        %v311 = vld [vmem:[#allocation2 + $0x50] sm:$0xff]
        %v312 = vld [vmem:[#allocation2 + $0x58] sm:$0xff]
        %v313 = vld [vmem:[#allocation2 + $0x60] sm:$0xff]
        %v314 = vld [vmem:[#allocation2 + $0x68] sm:$0xff]
        %v315 = vld [vmem:[#allocation2 + $0x70] sm:$0xff]
        %v316 = vld [vmem:[#allocation2 + $0x78] sm:$0xff]
        %v317 = vld [vmem:[%s233] sm:$0xf]
        %v318 = vld [vmem:[%s233 + $0x4] sm:$0xf]
        %v319 = vld [vmem:[%s233 + $0x8] sm:$0xf]
        %v320 = vld [vmem:[%s233 + $0xc] sm:$0xf]
        %v321 = vld [vmem:[%s233 + $0x10] sm:$0xf]
        %v322 = vld [vmem:[%s233 + $0x14] sm:$0xf]
        %v323 = vld [vmem:[%s233 + $0x18] sm:$0xf]
        %v324 = vld [vmem:[%s233 + $0x1c] sm:$0xf]
        %v325 = vld [vmem:[%s233 + $0x20] sm:$0xf]
        %v326 = vld [vmem:[%s233 + $0x24] sm:$0xf]
        %v327 = vld [vmem:[%s233 + $0x28] sm:$0xf]
        %v328 = vld [vmem:[%s233 + $0x2c] sm:$0xf]
        %v329 = vld [vmem:[%s233 + $0x30] sm:$0xf]
        %v330 = vld [vmem:[%s233 + $0x34] sm:$0xf]
        %v331 = vld [vmem:[%s233 + $0x38] sm:$0xf]
        %v332 = vld [vmem:[%s233 + $0x3c] sm:$0xf]
        %v333 = vld [vmem:[%s243] sm:$0xf]
        %v334 = vld [vmem:[%s243 + $0x4] sm:$0xf]
        %v335 = vld [vmem:[%s243 + $0x8] sm:$0xf]
        %v336 = vld [vmem:[%s243 + $0xc] sm:$0xf]
        %v337 = vld [vmem:[%s243 + $0x10] sm:$0xf]
        %v338 = vld [vmem:[%s243 + $0x14] sm:$0xf]
        %v339 = vld [vmem:[%s243 + $0x18] sm:$0xf]
        %v340 = vld [vmem:[%s243 + $0x1c] sm:$0xf]
        %v341 = vld [vmem:[%s243 + $0x20] sm:$0xf]
        %v342 = vld [vmem:[%s243 + $0x24] sm:$0xf]
        %v343 = vld [vmem:[%s243 + $0x28] sm:$0xf]
        %v344 = vld [vmem:[%s243 + $0x2c] sm:$0xf]
        %v345 = vld [vmem:[%s243 + $0x30] sm:$0xf]
        %v346 = vld [vmem:[%s243 + $0x34] sm:$0xf]
        %v347 = vld [vmem:[%s243 + $0x38] sm:$0xf]
        %v348 = vld [vmem:[%s243 + $0x3c] sm:$0xf]
        %v365 = vunpack.c.l.b16 %v317
        %v366 = vunpack.c.l.b16 %v318
        %v367 = vunpack.c.l.b16 %v319
        %v368 = vunpack.c.l.b16 %v320
        %v369 = vunpack.c.l.b16 %v321
        %v370 = vunpack.c.l.b16 %v322
        %v371 = vunpack.c.l.b16 %v323
        %v372 = vunpack.c.l.b16 %v324
        %v373 = vunpack.c.l.b16 %v325
        %v374 = vunpack.c.l.b16 %v326
        %v375 = vunpack.c.l.b16 %v327
        %v376 = vunpack.c.l.b16 %v328
        %v377 = vunpack.c.l.b16 %v329
        %v378 = vunpack.c.l.b16 %v330
        %v379 = vunpack.c.l.b16 %v331
        %v380 = vunpack.c.l.b16 %v332
        %v381 = vpack.c.b16 %v366, %v365
        %v382 = vpack.c.b16 %v368, %v367
        %v383 = vpack.c.b16 %v370, %v369
        %v384 = vpack.c.b16 %v372, %v371
        %v385 = vpack.c.b16 %v374, %v373
        %v386 = vpack.c.b16 %v376, %v375
        %v387 = vpack.c.b16 %v378, %v377
        %v388 = vpack.c.b16 %v380, %v379
        %v413 = vunpack.c.l.b16 %v333
        %v414 = vunpack.c.l.b16 %v334
        %v415 = vunpack.c.l.b16 %v335
        %v416 = vunpack.c.l.b16 %v336
        %v417 = vunpack.c.l.b16 %v337
        %v418 = vunpack.c.l.b16 %v338
        %v419 = vunpack.c.l.b16 %v339
        %v420 = vunpack.c.l.b16 %v340
        %v421 = vunpack.c.l.b16 %v341
        %v422 = vunpack.c.l.b16 %v342
        %v423 = vunpack.c.l.b16 %v343
        %v424 = vunpack.c.l.b16 %v344
        %v425 = vunpack.c.l.b16 %v345
        %v426 = vunpack.c.l.b16 %v346
        %v427 = vunpack.c.l.b16 %v347
        %v428 = vunpack.c.l.b16 %v348
        %v429 = vpack.c.b16 %v414, %v413
        %v430 = vpack.c.b16 %v416, %v415
        %v431 = vpack.c.b16 %v418, %v417
        %v432 = vpack.c.b16 %v420, %v419
        %v433 = vpack.c.b16 %v422, %v421
        %v434 = vpack.c.b16 %v424, %v423
        %v435 = vpack.c.b16 %v426, %v425
        %v436 = vpack.c.b16 %v428, %v427
        %445 = vmatpush.bf16.msra.mxu0 %v436
        %446 = vmatpush.bf16.msra.mxu0 %v435
        %447 = vmatpush.bf16.msra.mxu0 %v434
        %448 = vmatpush.bf16.msra.mxu0 %v433
        %449 = vmatpush.bf16.msra.mxu0 %v432
        %450 = vmatpush.bf16.msra.mxu0 %v431
        %451 = vmatpush.bf16.msra.mxu0 %v430
        %452 = vmatpush.bf16.msra.mxu0 %v429
        %453 = vmatmul.bf16.gmra.mxu0 %v381
        %v454 = vpop.f32.mrf.mxu0
        %v455 = vadd.f32 0.0, %v454
        %v456 = vpop.f32.mrf.mxu0
        %v457 = vadd.f32 0.0, %v456
        %458 = vmatmul.bf16.gmra.mxu0 %v382
        %v459 = vpop.f32.mrf.mxu0
        %v460 = vadd.f32 0.0, %v459
        %v461 = vpop.f32.mrf.mxu0
        %v462 = vadd.f32 0.0, %v461
        %463 = vmatmul.bf16.gmra.mxu0 %v383
        %v464 = vpop.f32.mrf.mxu0
        %v465 = vadd.f32 0.0, %v464
        %v466 = vpop.f32.mrf.mxu0
        %v467 = vadd.f32 0.0, %v466
        %468 = vmatmul.bf16.gmra.mxu0 %v384
        %v469 = vpop.f32.mrf.mxu0
        %v470 = vadd.f32 0.0, %v469
        %v471 = vpop.f32.mrf.mxu0
        %v472 = vadd.f32 0.0, %v471
        %473 = vmatmul.bf16.gmra.mxu0 %v385
        %v474 = vpop.f32.mrf.mxu0
        %v475 = vadd.f32 0.0, %v474
        %v476 = vpop.f32.mrf.mxu0
        %v477 = vadd.f32 0.0, %v476
        %478 = vmatmul.bf16.gmra.mxu0 %v386
        %v479 = vpop.f32.mrf.mxu0
        %v480 = vadd.f32 0.0, %v479
        %v481 = vpop.f32.mrf.mxu0
        %v482 = vadd.f32 0.0, %v481
        %483 = vmatmul.bf16.gmra.mxu0 %v387
        %v484 = vpop.f32.mrf.mxu0
        %v485 = vadd.f32 0.0, %v484
        %v486 = vpop.f32.mrf.mxu0
        %v487 = vadd.f32 0.0, %v486
        %488 = vmatmul.bf16.gmra.mxu0 %v388
        %v489 = vpop.f32.mrf.mxu0
        %v490 = vadd.f32 0.0, %v489
        %v491 = vpop.f32.mrf.mxu0
        %v492 = vadd.f32 0.0, %v491
        %493 = vdwg.mxu0
        %v494 = vadd.f32 %v301, %v455
        %v495 = vadd.f32 %v302, %v457
        %v496 = vadd.f32 %v303, %v460
        %v497 = vadd.f32 %v304, %v462
        %v498 = vadd.f32 %v305, %v465
        %v499 = vadd.f32 %v306, %v467
        %v500 = vadd.f32 %v307, %v470
        %v501 = vadd.f32 %v308, %v472
        %v502 = vadd.f32 %v309, %v475
        %v503 = vadd.f32 %v310, %v477
        %v504 = vadd.f32 %v311, %v480
        %v505 = vadd.f32 %v312, %v482
        %v506 = vadd.f32 %v313, %v485
        %v507 = vadd.f32 %v314, %v487
        %v508 = vadd.f32 %v315, %v490
        %v509 = vadd.f32 %v316, %v492
        %510 = vst [vmem:[#allocation2] sm:$0xff] %v494
        %511 = vst [vmem:[#allocation2 + $0x8] sm:$0xff] %v495
        %512 = vst [vmem:[#allocation2 + $0x10] sm:$0xff] %v496
        %513 = vst [vmem:[#allocation2 + $0x18] sm:$0xff] %v497
        %514 = vst [vmem:[#allocation2 + $0x20] sm:$0xff] %v498
        %515 = vst [vmem:[#allocation2 + $0x28] sm:$0xff] %v499
        %516 = vst [vmem:[#allocation2 + $0x30] sm:$0xff] %v500
        %517 = vst [vmem:[#allocation2 + $0x38] sm:$0xff] %v501
        %518 = vst [vmem:[#allocation2 + $0x40] sm:$0xff] %v502
        %519 = vst [vmem:[#allocation2 + $0x48] sm:$0xff] %v503
        %520 = vst [vmem:[#allocation2 + $0x50] sm:$0xff] %v504
        %521 = vst [vmem:[#allocation2 + $0x58] sm:$0xff] %v505
        %522 = vst [vmem:[#allocation2 + $0x60] sm:$0xff] %v506
        %523 = vst [vmem:[#allocation2 + $0x68] sm:$0xff] %v507
        %524 = vst [vmem:[#allocation2 + $0x70] sm:$0xff] %v508
        %525 = vst [vmem:[#allocation2 + $0x78] sm:$0xff] %v509
        %p526 = scmp.eq.s32.totalorder %s32, 2
        // Predicated region
        $region45: #{tpu_custom_call.1} parent=31 // pred_check
          %p527 = pneg %p526
        $region46: #{tpu_custom_call.1} parent=31 // pred_check_branch
          %529 = sbr.rel (%p527) target = $region48
        $region47: #{tpu_custom_call.1} parent=31 // pred_region
          %s530 = sld [smem:[#allocation4]]
          %v531 = vstv %s530
          %v532 = vrcp.pop %v531
          %v533 = vmul.f32 %v531, %v532
          %v534 = vsub.f32 1.0, %v533
          %v535 = vmul.f32 %v532, %v534
          %v536 = vadd.f32 %v532, %v535
          %vm537 = vweird.f32 %v531
          %vm538 = vweird.f32 %v532
          %vm539 = vmor %vm537, %vm538
          %v540 = vsel %vm539, %v532, %v536
          %v541 = vand.u32 2147483647, %v531
          %vm542 = vcmp.eq.f32.partialorder %v541, 8.507059e+37
          %v543 = vand.u32 %v531, 2147483648
          %v544 = vor.u32 1.1754944e-38, %v543
          %v545 = vsel %vm542, %v544, %v540
          %s546 = vtos %v545
          %v547 = vld [vmem:[#allocation2] sm:$0xff]
          %v548 = vld [vmem:[#allocation2 + $0x8] sm:$0xff]
          %v549 = vld [vmem:[#allocation2 + $0x10] sm:$0xff]
          %v550 = vld [vmem:[#allocation2 + $0x18] sm:$0xff]
          %v551 = vld [vmem:[#allocation2 + $0x20] sm:$0xff]
          %v552 = vld [vmem:[#allocation2 + $0x28] sm:$0xff]
          %v553 = vld [vmem:[#allocation2 + $0x30] sm:$0xff]
          %v554 = vld [vmem:[#allocation2 + $0x38] sm:$0xff]
          %v555 = vld [vmem:[#allocation2 + $0x40] sm:$0xff]
          %v556 = vld [vmem:[#allocation2 + $0x48] sm:$0xff]
          %v557 = vld [vmem:[#allocation2 + $0x50] sm:$0xff]
          %v558 = vld [vmem:[#allocation2 + $0x58] sm:$0xff]
          %v559 = vld [vmem:[#allocation2 + $0x60] sm:$0xff]
          %v560 = vld [vmem:[#allocation2 + $0x68] sm:$0xff]
          %v561 = vld [vmem:[#allocation2 + $0x70] sm:$0xff]
          %v562 = vld [vmem:[#allocation2 + $0x78] sm:$0xff]
          %v563 = vld [vmem:[%s279] sm:$0x1]
          %v565 = vperm.slane %v563, 0
          %v567 = vadd.f32 %v547, %v565
          %v568 = vadd.f32 %v548, %v565
          %v569 = vadd.f32 %v549, %v565
          %v570 = vadd.f32 %v550, %v565
          %v571 = vadd.f32 %v551, %v565
          %v572 = vadd.f32 %v552, %v565
          %v573 = vadd.f32 %v553, %v565
          %v574 = vadd.f32 %v554, %v565
          %v575 = vadd.f32 %v555, %v565
          %v576 = vadd.f32 %v556, %v565
          %v577 = vadd.f32 %v557, %v565
          %v578 = vadd.f32 %v558, %v565
          %v579 = vadd.f32 %v559, %v565
          %v580 = vadd.f32 %v560, %v565
          %v581 = vadd.f32 %v561, %v565
          %v582 = vadd.f32 %v562, %v565
          %v583 = vstv %s546
          %v584 = vmul.f32 %v567, %v583
          %v585 = vmul.f32 %v568, %v583
          %v586 = vmul.f32 %v569, %v583
          %v587 = vmul.f32 %v570, %v583
          %v588 = vmul.f32 %v571, %v583
          %v589 = vmul.f32 %v572, %v583
          %v590 = vmul.f32 %v573, %v583
          %v591 = vmul.f32 %v574, %v583
          %v592 = vmul.f32 %v575, %v583
          %v593 = vmul.f32 %v576, %v583
          %v594 = vmul.f32 %v577, %v583
          %v595 = vmul.f32 %v578, %v583
          %v596 = vmul.f32 %v579, %v583
          %v597 = vmul.f32 %v580, %v583
          %v598 = vmul.f32 %v581, %v583
          %v599 = vmul.f32 %v582, %v583
          %600 = vst [vmem:[%s274] sm:$0xff] %v584
          %601 = vst [vmem:[%s274 + $0x8] sm:$0xff] %v585
          %602 = vst [vmem:[%s274 + $0x10] sm:$0xff] %v586
          %603 = vst [vmem:[%s274 + $0x18] sm:$0xff] %v587
          %604 = vst [vmem:[%s274 + $0x20] sm:$0xff] %v588
          %605 = vst [vmem:[%s274 + $0x28] sm:$0xff] %v589
          %606 = vst [vmem:[%s274 + $0x30] sm:$0xff] %v590
          %607 = vst [vmem:[%s274 + $0x38] sm:$0xff] %v591
          %608 = vst [vmem:[%s274 + $0x40] sm:$0xff] %v592
          %609 = vst [vmem:[%s274 + $0x48] sm:$0xff] %v593
          %610 = vst [vmem:[%s274 + $0x50] sm:$0xff] %v594
          %611 = vst [vmem:[%s274 + $0x58] sm:$0xff] %v595
          %612 = vst [vmem:[%s274 + $0x60] sm:$0xff] %v596
          %613 = vst [vmem:[%s274 + $0x68] sm:$0xff] %v597
          %614 = vst [vmem:[%s274 + $0x70] sm:$0xff] %v598
          %615 = vst [vmem:[%s274 + $0x78] sm:$0xff] %v599
        $region48: #{tpu_custom_call.1} parent=31 // pred_fallthru
          _
        %s616 = sand.u32 %s136, 1
        %s617 = scalar_lea.sflag [#allocation7], %s616
        %s618 = sand.u32 %s136, 1
        %s619 = smul.addr %s618, 128
        %s620 = scalar_lea.vmem [#allocation10], %s619
        // Predicated region
        $region49: #{tpu_custom_call.1} parent=31 // pred_check
          %p621 = pneg %p146
        $region50: #{tpu_custom_call.1} parent=31 // pred_check_branch
          %623 = sbr.rel (%p621) target = $region52
        $region51: #{tpu_custom_call.1} parent=31 // pred_region
          %s624 = smul.u32 16, %s30
          %626 = vsyncadd %s617, 0
          %s627 = smul.addr %s624, 2
          %s628 = sadd.s32 %s31, %s627
          %s629 = smul.addr %s628, 8
          %s630 = scalar_lea.hbm %s4, %s629
          %s631 = sshll.u32 %s620, 4
          %s632 = int_to_ptr.vmem [resolvable:$true] %s631
          %s633 = sshll.u32 %s630, 4
          %s634 = int_to_ptr.hbm [resolvable:$true] %s633
          %639 = dma.vmem_to_hbm [thread:$0]  %s632, 2048, %s634, %s617, 128, 256, 8
        $region52: #{tpu_custom_call.1} parent=31 // pred_fallthru
          _
      $region32: #{tpu_custom_call.1} parent=5 // pred_fallthru
        _
      %p640 = scmp.le.s32.totalorder 2, %s20
      // Predicated region
      $region53: #{tpu_custom_call.1} parent=5 // pred_check
        %p641 = pneg %p640
      $region54: #{tpu_custom_call.1} parent=5 // pred_check_branch
        %643 = sbr.rel (%p641) target = $region56
      $region55: #{tpu_custom_call.1} parent=5 // pred_region
        %s644 = ssub.s32 %s20, 2
        // Predicated region
        $region57: #{tpu_custom_call.1} parent=55 // pred_check
          %p645 = pneg %p152
        $region58: #{tpu_custom_call.1} parent=55 // pred_check_branch
          %647 = sbr.rel (%p645) target = $region60
        $region59: #{tpu_custom_call.1} parent=55 // pred_region
          %s648 = sand.u32 %s137, 1
          %s649 = scalar_lea.sflag [#allocation7], %s648
          %s650 = sand.u32 %s137, 1
          %s651 = smul.addr %s650, 128
          %s652 = scalar_lea.vmem [#allocation10], %s651
          %654 = dma.done %s649, 2048
        $region60: #{tpu_custom_call.1} parent=55 // pred_fallthru
          _
      $region56: #{tpu_custom_call.1} parent=5 // pred_fallthru
        _
    $region6: #{tpu_custom_call.1} parent=1 // loop_footer
      %s24 = sadd.s32 1, %s20
    $region7: #{tpu_custom_call.1} parent=1 // loop_footer_branch
      %19 = sbr.rel target = $region3
    $region8: #{tpu_custom_call.1} parent=1 // loop_exit
      _
    %655 = vsyncpa [#allocation6], 1
    %s656 = scalar_lea.sflag [#allocation6], 1
    %657 = vsyncpa %s656, 1
    %658 = vsyncpa [#allocation9], 1
    %s659 = scalar_lea.sflag [#allocation9], 1
    %660 = vsyncpa %s659, 1
    %661 = vsyncpa [#allocation7], 1
    %s662 = scalar_lea.sflag [#allocation7], 1
    %663 = vsyncpa %s662, 1

</llo_original>
